<compile_context>
chip_gen: v6e
topology: v6e:2x2x1
jax: 0.10.0
libtpu: 0.0.40
codegen_flags: <defaults>
</compile_context>

<pallas_src>
import functools

import jax
import jax.numpy as jnp
from jax.experimental import pallas as pl
from jax.experimental.pallas import tpu as pltpu


def _gat_kernel(x_ref, ei_ref, w_ref, p_ref, out_ref, *, scaling, eps):
    f32 = jnp.float32
    bf16 = jnp.bfloat16

    x = x_ref[...]                                   # (N, F) f32
    N = x.shape[0]
    E = ei_ref.shape[1]                              # lane-padded edge count

    b = p_ref[0:1, :]                                # (1, H)
    gamma = p_ref[1:2, :]                            # (1, H)
    beta = p_ref[2:3, :]                             # (1, H)
    a1 = p_ref[3:4, :]                               # (1, H) attn weights, target half
    a2 = p_ref[4:5, :]                               # (1, H) attn weights, source half

    # h = LeakyReLU(x @ W + b)  (kept f32: feeds the skip connection and LayerNorm).
    h = jnp.dot(x, w_ref[...], preferred_element_type=f32) + b
    h = jnp.where(h >= 0, h, scaling * h)            # (N, H)

    # Node-level attention scalars on the VPU + lane reduction (no 2-wide MXU output).
    # a_b is DROPPED: it is constant per edge, so it cancels in the per-target softmax.
    # (A future per-edge bias would break this -- it must then be added to eij below.)
    alpha_t = jnp.sum(h * a1, axis=-1, keepdims=True)    # (N, 1)
    alpha_s = jnp.sum(h * a2, axis=-1, keepdims=True)    # (N, 1)

    # One-hot incidence masks, E lane-dense.  Padded columns carry sentinel id N and
    # therefore never match the iota -> all-False columns, zero contribution everywhere.
    tgt = ei_ref[0:1, :]                             # (1, E) int32
    src = ei_ref[1:2, :]                             # (1, E) int32
    node_iota = jax.lax.broadcasted_iota(jnp.int32, (N, E), 0)
    m_t = node_iota == tgt                           # (N, E) target scatter/gather mask
    m_s = node_iota == src                           # (N, E) source gather mask

    # ---- lane-dense scatter-softmax over edges grouped by target node -------------
    # Per-edge logits (1,E): the two exact one-hot gathers fused into ONE sublane
    # reduction pass (VPU add trades away one XLU reduce over (N,E)).
    eij = jnp.sum(jnp.where(m_t, alpha_t, 0.0) + jnp.where(m_s, alpha_s, 0.0),
                  axis=0, keepdims=True)                                        # (1, E)

    # Per-target max shift (matches torch_scatter.scatter_softmax; robust).
    neg_big = jnp.float32(-1e30)
    seg_max = jnp.max(jnp.where(m_t, eij, neg_big), axis=1, keepdims=True)      # (N, 1)
    edge_max = jnp.sum(jnp.where(m_t, seg_max, 0.0), axis=0, keepdims=True)     # (1, E)

    exp_e = jnp.exp(eij - edge_max)                                             # (1, E) EUP
    # Unnormalized exp folded into the target scatter mask; normalization happens
    # EXACTLY in f32 after the matmul (no edge_inv gather, no per-edge multiply).
    m_t_w = jnp.where(m_t, exp_e, 0.0)                                          # (N, E) f32
    seg_sum = jnp.sum(m_t_w, axis=1, keepdims=True)                             # (N, 1)
    # Isolated targets (seg_sum == 0) have an all-zero agg row, so the clamp is safe.
    seg_inv = 1.0 / jnp.where(seg_sum > 0, seg_sum, 1.0)                        # (N, 1) f32

    # ---- message passing on the MXU in bf16 (f32 accumulation) --------------------
    h_b = h.astype(bf16)
    m_s_b = m_s.astype(bf16)                                                    # exact 0/1
    m_t_w_b = m_t_w.astype(bf16)
    if E >= N:
        # Reassociated: A = m_t_w @ m_s^T (N,N) then agg = A @ h.  No (E,H) h_j buffer;
        # MACs drop from N*E*H + E*N*H to N*E*N + N*N*H (big win whenever E >= N).
        adj_w = jax.lax.dot_general(m_t_w_b, m_s_b, (((1,), (1,)), ((), ())),
                                    preferred_element_type=f32)                 # (N, N)
        agg = jnp.dot(adj_w.astype(bf16), h_b, preferred_element_type=f32)      # (N, H)
    else:
        h_j = jax.lax.dot_general(m_s_b, h_b, (((0,), (0,)), ((), ())),
                                  preferred_element_type=f32)                   # (E, H)
        agg = jnp.dot(m_t_w_b, h_j.astype(bf16), preferred_element_type=f32)    # (N, H)
    agg = agg * seg_inv            # exact f32 per-target softmax normalization

    # Skip connection, LeakyReLU, LayerNorm over the hidden dim.
    out = agg + h
    out = jnp.where(out >= 0, out, scaling * out)
    mean = jnp.mean(out, axis=-1, keepdims=True)
    var = jnp.mean((out - mean) ** 2, axis=-1, keepdims=True)
    out_ref[...] = (out - mean) * jax.lax.rsqrt(var + eps) * gamma + beta


def gat_v3_forward(node_features, edge_index, params, *, scaling=0.2, eps=1e-5):
    """node_features: (N, F) f32, edge_index: (2, E) int32 [target; source]."""
    N, _ = node_features.shape
    H = params["w_w"].shape[1]
    E = edge_index.shape[1]

    # Pad the edge axis to a lane-aligned width.  Padded columns use sentinel id N
    # (outside [0, N)), so their one-hot mask columns are all-False in the kernel and
    # they contribute nothing to logits, segment sums or the aggregation.
    E_pad = ((E + 127) // 128) * 128
    ei = edge_index.astype(jnp.int32)
    if E_pad != E:
        ei = jnp.concatenate(
            [ei, jnp.full((2, E_pad - E), N, dtype=jnp.int32)], axis=1)

    # Collapse the tiny (1,H) parameters + attention rows into ONE (5,H) input.
    # a_b dropped: constant per edge -> cancels in the per-target softmax (see kernel).
    pvec = jnp.concatenate(
        [params["w_b"], params["gamma"], params["beta"],
         params["a1"].T, params["a2"].T], axis=0)                      # (5, H)

    kernel = functools.partial(_gat_kernel, scaling=scaling, eps=eps)
    vmem = pltpu.MemorySpace.VMEM
    # Small graph: everything fits a single VMEM block -> no grid, whole-array blocks,
    # with operand placement made explicit.
    return pl.pallas_call(
        kernel,
        out_shape=jax.ShapeDtypeStruct((N, H), jnp.float32),
        in_specs=[pl.BlockSpec(memory_space=vmem),   # node_features (N, F)
                  pl.BlockSpec(memory_space=vmem),   # edge_index    (2, E_pad)
                  pl.BlockSpec(memory_space=vmem),   # W             (F, H)
                  pl.BlockSpec(memory_space=vmem)],  # param slab    (5, H)
        out_specs=pl.BlockSpec(memory_space=vmem),
    )(node_features, ei, params["w_w"], pvec)


def ref_forward(node_features, edge_index, params, *, scaling=0.2, eps=1e-5):
    """Pure-JAX reference (mirrors the PyTorch module, dropout disabled)."""
    hp = jax.lax.Precision.HIGHEST
    w_w, w_b = params["w_w"], params["w_b"]
    a1, a2, ab = params["a1"], params["a2"], params["a_b"]
    gamma, beta = params["gamma"], params["beta"]
    N = node_features.shape[0]

    h = jnp.dot(node_features, w_w, precision=hp) + w_b
    h = jnp.where(h >= 0, h, scaling * h)
    tgt, src = edge_index[0], edge_index[1]
    h_i, h_j = h[tgt], h[src]
    e = (jnp.dot(h_i, a1, precision=hp) + jnp.dot(h_j, a2, precision=hp) + ab)[:, 0]
    seg_max = jax.ops.segment_max(e, tgt, num_segments=N)
    ex = jnp.exp(e - seg_max[tgt])
    seg_sum = jax.ops.segment_sum(ex, tgt, num_segments=N)
    score = (ex / seg_sum[tgt])[:, None]
    msg = score * h_j
    agg = jax.ops.segment_sum(msg, tgt, num_segments=N)
    out = agg + h
    out = jnp.where(out >= 0, out, scaling * out)
    mean = out.mean(-1, keepdims=True)
    var = ((out - mean) ** 2).mean(-1, keepdims=True)
    return (out - mean) / jnp.sqrt(var + eps) * gamma + beta


def init_params(key, n_node_features, n_hidden_features):
    F, H = n_node_features, n_hidden_features
    ks = jax.random.split(key, 7)
    lim_w = 1.0 / jnp.sqrt(F)
    lim_a = 1.0 / jnp.sqrt(2.0 * H)
    return {
        # nn.Linear(F, H): weight stored pre-transposed as (F, H), bias (1, H)
        "w_w": jax.random.uniform(ks[0], (F, H), jnp.float32, -lim_w, lim_w),
        "w_b": jax.random.uniform(ks[1], (1, H), jnp.float32, -lim_w, lim_w),
        # nn.Linear(2H, 1): weight split into two (H, 1) halves, bias (1, 1)
        "a1": jax.random.uniform(ks[2], (H, 1), jnp.float32, -lim_a, lim_a),
        "a2": jax.random.uniform(ks[3], (H, 1), jnp.float32, -lim_a, lim_a),
        "a_b": jax.random.uniform(ks[4], (1, 1), jnp.float32, -lim_a, lim_a),
        # nn.LayerNorm(H) affine params (randomized to exercise the affine path)
        "gamma": 1.0 + 0.1 * jax.random.normal(ks[5], (1, H), jnp.float32),
        "beta": 0.1 * jax.random.normal(ks[6], (1, H), jnp.float32),
    }


if __name__ == "__main__":
    key = jax.random.PRNGKey(0)
    # H = 128 keeps the output block lane-dense; E is padded to 128 in the wrapper.
    # NOTE: these toy sizes are for correctness only -- do not tune/benchmark at them.
    N_NODES, N_FEAT, N_HIDDEN, N_EDGES = 16, 8, 128, 48
    SCALING = 0.2  # module default LeakyReLU negative slope

    k_x, k_t, k_s, k_p = jax.random.split(key, 4)
    node_features = jax.random.normal(k_x, (N_NODES, N_FEAT), jnp.float32)
    tgt = jax.random.randint(k_t, (N_EDGES,), 0, N_NODES, jnp.int32)
    src = jax.random.randint(k_s, (N_EDGES,), 0, N_NODES, jnp.int32)
    edge_index = jnp.stack([tgt, src], axis=0)              # (2, E) COO
    params = init_params(k_p, N_FEAT, N_HIDDEN)

    out = gat_v3_forward(node_features, edge_index, params, scaling=SCALING)
    out = jax.block_until_ready(out)

    ref = ref_forward(node_features, edge_index, params, scaling=SCALING)
    assert out.shape == (N_NODES, N_HIDDEN), out.shape
    # bf16 mask/exp matmuls (f32 accumulation, exact f32 normalization) => bf16-level tol.
    assert bool(jnp.allclose(out, ref, atol=2e-2, rtol=2e-2)), (
        "mismatch vs reference: max abs err "
        f"{float(jnp.max(jnp.abs(out - ref)))}")
    print("KERNEL_OK")
</pallas_src>

<mosaic_0001>
module attributes {stable_mosaic.version = 11 : i64} {
  func.func @_gat_kernel(%arg0: memref<16x8xf32, #tpu.memory_space<vmem>>, %arg1: memref<2x128xi32, #tpu.memory_space<vmem>>, %arg2: memref<8x128xf32, #tpu.memory_space<vmem>>, %arg3: memref<5x128xf32, #tpu.memory_space<vmem>>, %arg4: memref<16x128xf32, #tpu.memory_space<vmem>>) attributes {dimension_semantics = [], scalar_prefetch = 0 : i64, scratch_operands = 0 : i64, tpu.core_type = #tpu.core_type<tc>} {
    %c0 = arith.constant 0 : index
    %c0_0 = arith.constant 0 : index
    %0 = vector.load %arg0[%c0, %c0_0] : memref<16x8xf32, #tpu.memory_space<vmem>>, vector<16x8xf32>
    %c0_1 = arith.constant 0 : index
    %c0_2 = arith.constant 0 : index
    %1 = vector.load %arg3[%c0_1, %c0_2] : memref<5x128xf32, #tpu.memory_space<vmem>>, vector<1x128xf32>
    %c1 = arith.constant 1 : index
    %c0_3 = arith.constant 0 : index
    %2 = vector.load %arg3[%c1, %c0_3] : memref<5x128xf32, #tpu.memory_space<vmem>>, vector<1x128xf32>
    %c2 = arith.constant 2 : index
    %c0_4 = arith.constant 0 : index
    %3 = vector.load %arg3[%c2, %c0_4] : memref<5x128xf32, #tpu.memory_space<vmem>>, vector<1x128xf32>
    %c3 = arith.constant 3 : index
    %c0_5 = arith.constant 0 : index
    %4 = vector.load %arg3[%c3, %c0_5] : memref<5x128xf32, #tpu.memory_space<vmem>>, vector<1x128xf32>
    %c4 = arith.constant 4 : index
    %c0_6 = arith.constant 0 : index
    %5 = vector.load %arg3[%c4, %c0_6] : memref<5x128xf32, #tpu.memory_space<vmem>>, vector<1x128xf32>
    %c0_7 = arith.constant 0 : index
    %c0_8 = arith.constant 0 : index
    %6 = vector.load %arg2[%c0_7, %c0_8] : memref<8x128xf32, #tpu.memory_space<vmem>>, vector<8x128xf32>
    %cst = arith.constant dense<0.000000e+00> : vector<16x128xf32>
    %7 = tpu.matmul %0, %6, %cst {dimension_numbers = #tpu.dot_dimension_numbers<[1], [0], [0], [1], [0, 0, 1, 1], [], []>} : vector<16x8xf32>, vector<8x128xf32>, vector<16x128xf32> -> vector<16x128xf32>
    %8 = vector.broadcast %1 : vector<1x128xf32> to vector<16x128xf32>
    %9 = arith.addf %7, %8 : vector<16x128xf32>
    %cst_9 = arith.constant 0.000000e+00 : f32
    %10 = vector.broadcast %cst_9 : f32 to vector<16x128xf32>
    %11 = arith.cmpf oge, %9, %10 : vector<16x128xf32>
    %cst_10 = arith.constant 2.000000e-01 : f32
    %12 = vector.broadcast %cst_10 : f32 to vector<16x128xf32>
    %13 = arith.mulf %12, %9 : vector<16x128xf32>
    %14 = arith.select %11, %9, %13 : vector<16x128xi1>, vector<16x128xf32>
    %15 = vector.broadcast %4 : vector<1x128xf32> to vector<16x128xf32>
    %16 = arith.mulf %14, %15 : vector<16x128xf32>
    %cst_11 = arith.constant dense<0.000000e+00> : vector<16xf32>
    %17 = vector.multi_reduction <add>, %16, %cst_11 [1] : vector<16x128xf32> to vector<16xf32>
    %18 = vector.shape_cast %17 : vector<16xf32> to vector<16x1xf32>
    %19 = vector.broadcast %5 : vector<1x128xf32> to vector<16x128xf32>
    %20 = arith.mulf %14, %19 : vector<16x128xf32>
    %cst_12 = arith.constant dense<0.000000e+00> : vector<16xf32>
    %21 = vector.multi_reduction <add>, %20, %cst_12 [1] : vector<16x128xf32> to vector<16xf32>
    %22 = vector.shape_cast %21 : vector<16xf32> to vector<16x1xf32>
    %c0_13 = arith.constant 0 : index
    %c0_14 = arith.constant 0 : index
    %23 = vector.load %arg1[%c0_13, %c0_14] : memref<2x128xi32, #tpu.memory_space<vmem>>, vector<1x128xi32>
    %c1_15 = arith.constant 1 : index
    %c0_16 = arith.constant 0 : index
    %24 = vector.load %arg1[%c1_15, %c0_16] : memref<2x128xi32, #tpu.memory_space<vmem>>, vector<1x128xi32>
    %25 = tpu.iota {dimensions = array<i32: 0>} : vector<16x128xi32>
    %26 = vector.broadcast %23 : vector<1x128xi32> to vector<16x128xi32>
    %27 = arith.cmpi eq, %25, %26 : vector<16x128xi32>
    %28 = vector.broadcast %24 : vector<1x128xi32> to vector<16x128xi32>
    %29 = arith.cmpi eq, %25, %28 : vector<16x128xi32>
    %cst_17 = arith.constant 0.000000e+00 : f32
    %30 = vector.shape_cast %18 : vector<16x1xf32> to vector<16x1xf32>
    %31 = vector.broadcast %30 : vector<16x1xf32> to vector<16x128xf32>
    %32 = vector.broadcast %cst_17 : f32 to vector<16x128xf32>
    %33 = arith.select %27, %31, %32 : vector<16x128xi1>, vector<16x128xf32>
    %cst_18 = arith.constant 0.000000e+00 : f32
    %34 = vector.shape_cast %22 : vector<16x1xf32> to vector<16x1xf32>
    %35 = vector.broadcast %34 : vector<16x1xf32> to vector<16x128xf32>
    %36 = vector.broadcast %cst_18 : f32 to vector<16x128xf32>
    %37 = arith.select %29, %35, %36 : vector<16x128xi1>, vector<16x128xf32>
    %38 = arith.addf %33, %37 : vector<16x128xf32>
    %cst_19 = arith.constant dense<0.000000e+00> : vector<128xf32>
    %39 = vector.multi_reduction <add>, %38, %cst_19 [0] : vector<16x128xf32> to vector<128xf32>
    %40 = vector.shape_cast %39 : vector<128xf32> to vector<1x128xf32>
    %cst_20 = arith.constant -1.000000e+30 : f32
    %41 = vector.shape_cast %40 : vector<1x128xf32> to vector<1x128xf32>
    %42 = vector.broadcast %41 : vector<1x128xf32> to vector<16x128xf32>
    %43 = vector.broadcast %cst_20 : f32 to vector<16x128xf32>
    %44 = arith.select %27, %42, %43 : vector<16x128xi1>, vector<16x128xf32>
    %cst_21 = arith.constant dense<0xFF800000> : vector<16xf32>
    %45 = vector.multi_reduction <maximumf>, %44, %cst_21 [1] : vector<16x128xf32> to vector<16xf32>
    %46 = vector.shape_cast %45 : vector<16xf32> to vector<16x1xf32>
    %cst_22 = arith.constant 0.000000e+00 : f32
    %47 = vector.shape_cast %46 : vector<16x1xf32> to vector<16x1xf32>
    %48 = vector.broadcast %47 : vector<16x1xf32> to vector<16x128xf32>
    %49 = vector.broadcast %cst_22 : f32 to vector<16x128xf32>
    %50 = arith.select %27, %48, %49 : vector<16x128xi1>, vector<16x128xf32>
    %cst_23 = arith.constant dense<0.000000e+00> : vector<128xf32>
    %51 = vector.multi_reduction <add>, %50, %cst_23 [0] : vector<16x128xf32> to vector<128xf32>
    %52 = vector.shape_cast %51 : vector<128xf32> to vector<1x128xf32>
    %53 = arith.subf %40, %52 : vector<1x128xf32>
    %54 = math.exp %53 : vector<1x128xf32>
    %cst_24 = arith.constant 0.000000e+00 : f32
    %55 = vector.shape_cast %54 : vector<1x128xf32> to vector<1x128xf32>
    %56 = vector.broadcast %55 : vector<1x128xf32> to vector<16x128xf32>
    %57 = vector.broadcast %cst_24 : f32 to vector<16x128xf32>
    %58 = arith.select %27, %56, %57 : vector<16x128xi1>, vector<16x128xf32>
    %cst_25 = arith.constant dense<0.000000e+00> : vector<16xf32>
    %59 = vector.multi_reduction <add>, %58, %cst_25 [1] : vector<16x128xf32> to vector<16xf32>
    %60 = vector.shape_cast %59 : vector<16xf32> to vector<16x1xf32>
    %cst_26 = arith.constant 0.000000e+00 : f32
    %61 = vector.broadcast %cst_26 : f32 to vector<16x1xf32>
    %62 = arith.cmpf ogt, %60, %61 : vector<16x1xf32>
    %cst_27 = arith.constant 1.000000e+00 : f32
    %63 = vector.broadcast %cst_27 : f32 to vector<16x1xf32>
    %64 = arith.select %62, %60, %63 : vector<16x1xi1>, vector<16x1xf32>
    %cst_28 = arith.constant 1.000000e+00 : f32
    %65 = vector.broadcast %cst_28 : f32 to vector<16x1xf32>
    %66 = arith.divf %65, %64 : vector<16x1xf32>
    %67 = arith.truncf %14 : vector<16x128xf32> to vector<16x128xbf16>
    %68 = arith.extui %29 : vector<16x128xi1> to vector<16x128xi32>
    %69 = arith.sitofp %68 : vector<16x128xi32> to vector<16x128xf32>
    %70 = arith.truncf %69 : vector<16x128xf32> to vector<16x128xbf16>
    %71 = arith.truncf %58 : vector<16x128xf32> to vector<16x128xbf16>
    %cst_29 = arith.constant dense<0.000000e+00> : vector<16x16xf32>
    %72 = tpu.matmul %71, %70, %cst_29 {dimension_numbers = #tpu.dot_dimension_numbers<[1], [1], [0], [0], [0, 0, 1, 0], [], []>} : vector<16x128xbf16>, vector<16x128xbf16>, vector<16x16xf32> -> vector<16x16xf32>
    %73 = arith.truncf %72 : vector<16x16xf32> to vector<16x16xbf16>
    %cst_30 = arith.constant dense<0.000000e+00> : vector<16x128xf32>
    %74 = tpu.matmul %73, %67, %cst_30 {dimension_numbers = #tpu.dot_dimension_numbers<[1], [0], [0], [1], [0, 0, 1, 1], [], []>} : vector<16x16xbf16>, vector<16x128xbf16>, vector<16x128xf32> -> vector<16x128xf32>
    %75 = vector.broadcast %66 : vector<16x1xf32> to vector<16x128xf32>
    %76 = arith.mulf %74, %75 : vector<16x128xf32>
    %77 = arith.addf %76, %14 : vector<16x128xf32>
    %cst_31 = arith.constant 0.000000e+00 : f32
    %78 = vector.broadcast %cst_31 : f32 to vector<16x128xf32>
    %79 = arith.cmpf oge, %77, %78 : vector<16x128xf32>
    %cst_32 = arith.constant 2.000000e-01 : f32
    %80 = vector.broadcast %cst_32 : f32 to vector<16x128xf32>
    %81 = arith.mulf %80, %77 : vector<16x128xf32>
    %82 = arith.select %79, %77, %81 : vector<16x128xi1>, vector<16x128xf32>
    %cst_33 = arith.constant dense<0.000000e+00> : vector<16xf32>
    %83 = vector.multi_reduction <add>, %82, %cst_33 [1] : vector<16x128xf32> to vector<16xf32>
    %84 = vector.shape_cast %83 : vector<16xf32> to vector<16x1xf32>
    %cst_34 = arith.constant 1.280000e+02 : f32
    %85 = vector.broadcast %cst_34 : f32 to vector<16x1xf32>
    %86 = arith.divf %84, %85 : vector<16x1xf32>
    %87 = vector.broadcast %86 : vector<16x1xf32> to vector<16x128xf32>
    %88 = arith.subf %82, %87 : vector<16x128xf32>
    %89 = arith.mulf %88, %88 : vector<16x128xf32>
    %cst_35 = arith.constant dense<0.000000e+00> : vector<16xf32>
    %90 = vector.multi_reduction <add>, %89, %cst_35 [1] : vector<16x128xf32> to vector<16xf32>
    %91 = vector.shape_cast %90 : vector<16xf32> to vector<16x1xf32>
    %cst_36 = arith.constant 1.280000e+02 : f32
    %92 = vector.broadcast %cst_36 : f32 to vector<16x1xf32>
    %93 = arith.divf %91, %92 : vector<16x1xf32>
    %94 = vector.broadcast %86 : vector<16x1xf32> to vector<16x128xf32>
    %95 = arith.subf %82, %94 : vector<16x128xf32>
    %cst_37 = arith.constant 9.99999974E-6 : f32
    %96 = vector.broadcast %cst_37 : f32 to vector<16x1xf32>
    %97 = arith.addf %93, %96 : vector<16x1xf32>
    %98 = math.rsqrt %97 : vector<16x1xf32>
    %99 = vector.broadcast %98 : vector<16x1xf32> to vector<16x128xf32>
    %100 = arith.mulf %95, %99 : vector<16x128xf32>
    %101 = vector.broadcast %2 : vector<1x128xf32> to vector<16x128xf32>
    %102 = arith.mulf %100, %101 : vector<16x128xf32>
    %103 = vector.broadcast %3 : vector<1x128xf32> to vector<16x128xf32>
    %104 = arith.addf %102, %103 : vector<16x128xf32>
    %c0_38 = arith.constant 0 : index
    %c0_39 = arith.constant 0 : index
    %105 = vector.load %arg4[%c0_38, %c0_39] : memref<16x128xf32, #tpu.memory_space<vmem>>, vector<16x128xf32>
    tpu.vector_store %arg4[%c0_38, %c0_39], %104 {strides = array<i32>} : memref<16x128xf32, #tpu.memory_space<vmem>>, vector<16x128xf32>,
    return
  }
}

</mosaic_0001>

<llo_original>
// kernel: tpu_custom_call.1
$region0: #{tpu_custom_call.1}
  #allocation0 [shape = 'u32[]', space=smem, size = 0x4, offset = 0x4, fixed_abs, tag = 'smem constant byte address 0x4 - core index']
  #allocation1 [shape = 'u32[144,128]{1,0:T(1,128)}', space=vmem, size = 0x12000, scoped, tag = 'internal scratch']
  %s0 = inlined_call_operand.vmem [shape: f32[16,8], index: 0, kind: input, shape index: {}]
  %s1 = inlined_call_operand.vmem [shape: s32[2,128], index: 1, kind: input, shape index: {}]
  %s2 = inlined_call_operand.vmem [shape: f32[8,128], index: 2, kind: input, shape index: {}]
  %s3 = inlined_call_operand.vmem [shape: f32[5,128], index: 3, kind: input, shape index: {}]
  %s4 = inlined_call_operand.hbm [shape: f32[16,128], index: 4, kind: output, shape index: {}]
  %s5 = sld [smem:[#allocation0]]
  $region26: #{tpu_custom_call.1} parent=0
    _
  %s7 = ssub.s32 1, %s5
  %s8 = scalar_select 0, %s7, %s5
  $region1: #{tpu_custom_call.1} parent=0
    #allocation2 [shape = 'u8[8192]{0}', space=vmem, size = 0x2000, scoped, tag = 'output window, operand 0, single buffered']
    #allocation3 [shape = 's32[1]{0}', space=sflag, size = 0x4, scoped, tag = 'scoped memory for tpu_custom_call.1']
    %9 = vsyncpa [#allocation3], 0
    // Predicated region
    $region2: #{tpu_custom_call.1} parent=1 // pred_check
      _
    $region3: #{tpu_custom_call.1} parent=1 // pred_check_branch
      %11 = sbr.rel (0) target = $region5
    $region4: #{tpu_custom_call.1} parent=1 // pred_region
      _
    $region5: #{tpu_custom_call.1} parent=1 // pred_fallthru
      _
    // Predicated region
    $region6: #{tpu_custom_call.1} parent=1 // pred_check
      _
    $region7: #{tpu_custom_call.1} parent=1 // pred_check_branch
      %13 = sbr.rel (0) target = $region9
    $region8: #{tpu_custom_call.1} parent=1 // pred_region
      _
    $region9: #{tpu_custom_call.1} parent=1 // pred_fallthru
      _
    // Predicated region
    $region10: #{tpu_custom_call.1} parent=1 // pred_check
      _
    $region11: #{tpu_custom_call.1} parent=1 // pred_check_branch
      %15 = sbr.rel (0) target = $region13
    $region12: #{tpu_custom_call.1} parent=1 // pred_region
      _
    $region13: #{tpu_custom_call.1} parent=1 // pred_fallthru
      _
    // Predicated region
    $region14: #{tpu_custom_call.1} parent=1 // pred_check
      _
    $region15: #{tpu_custom_call.1} parent=1 // pred_check_branch
      %17 = sbr.rel (0) target = $region17
    $region16: #{tpu_custom_call.1} parent=1 // pred_region
      _
    $region17: #{tpu_custom_call.1} parent=1 // pred_fallthru
      _
    %v19 = vld [vmem:[%s0] sm:$0xff]
    %v20 = vld [vmem:[%s0 + $0x8] sm:$0xff]
    %v21 = vld [vmem:[%s3] sm:$0x1]
    %v22 = vld [vmem:[%s3 + $0x1] sm:$0x1]
    %v23 = vld [vmem:[%s3 + $0x2] sm:$0x1]
    %v24 = vld [vmem:[%s3 + $0x3] sm:$0x1]
    %v25 = vld [vmem:[%s3 + $0x4] sm:$0x1]
    %v26 = vld [vmem:[%s2] sm:$0xff]
    %v27 = vlaneseq
    %v28 = vshrl.u32 %v27, 7
    %v29 = vsub.s32 0, %v28
    %v30 = vrot.slane %v21, %v29
    %vm31 = vcmask 64512
    %v33 = vsel %vm31, %v19, 0
    %v36 = vsel %vm31, %v20, 0
    %38 = vmatprep.subr.mxu0 0.0
    %39 = vmatpush1.msra.mxu0 0.0
    %40 = vmatprep.subr.mxu0 0.0
    %41 = vmatpush1.msra.mxu0 0.0
    %42 = vmatprep.subr.mxu0 0.0
    %43 = vmatpush1.msra.mxu0 0.0
    %44 = vmatprep.subr.mxu0 0.0
    %45 = vmatpush1.msra.mxu0 0.0
    %46 = vmatprep.subr.mxu0 0.0
    %47 = vmatpush1.msra.mxu0 0.0
    %48 = vmatprep.subr.mxu0 0.0
    %49 = vmatpush1.msra.mxu0 0.0
    %50 = vmatprep.subr.mxu0 0.0
    %51 = vmatpush1.msra.mxu0 0.0
    %52 = vmatprep.subr.mxu0 0.0
    %53 = vmatpush1.msra.mxu0 0.0
    %54 = vmatprep.subr.mxu0 0.0
    %55 = vmatpush1.msra.mxu0 0.0
    %56 = vmatprep.subr.mxu0 0.0
    %57 = vmatpush1.msra.mxu0 0.0
    %58 = vmatprep.subr.mxu0 0.0
    %59 = vmatpush1.msra.mxu0 0.0
    %60 = vmatprep.subr.mxu0 0.0
    %61 = vmatpush1.msra.mxu0 0.0
    %62 = vmatprep.subr.mxu0 0.0
    %63 = vmatpush1.msra.mxu0 0.0
    %64 = vmatprep.subr.mxu0 0.0
    %65 = vmatpush1.msra.mxu0 0.0
    %66 = vmatprep.subr.mxu0 0.0
    %67 = vmatpush1.msra.mxu0 0.0
    %68 = vmatprep.subr.mxu0 0.0
    %69 = vmatpush1.msra.mxu0 %v26
    %70 = vmatprep.subr.mxu0 0.0
    %71 = vmatpush2.msra.mxu0 0.0
    %72 = vmatprep.subr.mxu0 0.0
    %73 = vmatpush2.msra.mxu0 0.0
    %74 = vmatprep.subr.mxu0 0.0
    %75 = vmatpush2.msra.mxu0 0.0
    %76 = vmatprep.subr.mxu0 0.0
    %77 = vmatpush2.msra.mxu0 0.0
    %78 = vmatprep.subr.mxu0 0.0
    %79 = vmatpush2.msra.mxu0 0.0
    %80 = vmatprep.subr.mxu0 0.0
    %81 = vmatpush2.msra.mxu0 0.0
    %82 = vmatprep.subr.mxu0 0.0
    %83 = vmatpush2.msra.mxu0 0.0
    %84 = vmatprep.subr.mxu0 0.0
    %85 = vmatpush2.msra.mxu0 0.0
    %86 = vmatprep.subr.mxu0 0.0
    %87 = vmatpush2.msra.mxu0 0.0
    %88 = vmatprep.subr.mxu0 0.0
    %89 = vmatpush2.msra.mxu0 0.0
    %90 = vmatprep.subr.mxu0 0.0
    %91 = vmatpush2.msra.mxu0 0.0
    %92 = vmatprep.subr.mxu0 0.0
    %93 = vmatpush2.msra.mxu0 0.0
    %94 = vmatprep.subr.mxu0 0.0
    %95 = vmatpush2.msra.mxu0 0.0
    %96 = vmatprep.subr.mxu0 0.0
    %97 = vmatpush2.msra.mxu0 0.0
    %98 = vmatprep.subr.mxu0 0.0
    %99 = vmatpush2.msra.mxu0 0.0
    %100 = vmatprep.subr.mxu0 0.0
    %101 = vmatpush2.msra.mxu0 0.0
    %102 = vmatprep.mubr.f32.mxu0 0.0
    %103 = vmatmul.mubr.f32.gmra.mxu0 %v33
    %v104 = vpop.f32.mrf.mxu0
    %v105 = vadd.f32 %v30, %v104
    %v106 = vpop.f32.mrf.mxu0
    %107 = vmatprep.mubr.f32.mxu0 0.0
    %108 = vmatmul.mubr.f32.gmra.mxu0 %v36
    %v109 = vpop.f32.mrf.mxu0
    %v110 = vadd.f32 %v30, %v109
    %v111 = vpop.f32.mrf.mxu0
    %112 = vdwg.mxu0
    %vm113 = vcmp.ge.f32.partialorder %v105, 0.0
    %vm114 = vcmp.ge.f32.partialorder %v110, 0.0
    %v115 = vmul.f32 %v105, 0.2
    %v116 = vmul.f32 %v110, 0.2
    %v117 = vsel %vm113, %v105, %v115
    %v118 = vsel %vm114, %v110, %v116
    %v119 = vlaneseq
    %v120 = vshrl.u32 %v119, 7
    %v121 = vsub.s32 0, %v120
    %v122 = vrot.slane %v24, %v121
    %v123 = vmul.f32 %v117, %v122
    %v124 = vmul.f32 %v118, %v122
    %125 = vadd.xlane.f32.xlu0 %v123
    %v126 = vpop.xlane.xlu0 %125
    %127 = vadd.xlane.f32.xlu0 %v124
    %v128 = vpop.xlane.xlu0 %127
    %v129 = vlaneseq
    %v130 = vshrl.u32 %v129, 7
    %v131 = vsub.s32 0, %v130
    %v132 = vrot.slane %v25, %v131
    %v133 = vmul.f32 %v117, %v132
    %v134 = vmul.f32 %v118, %v132
    %135 = vadd.xlane.f32.xlu0 %v133
    %v136 = vpop.xlane.xlu0 %135
    %137 = vadd.xlane.f32.xlu0 %v134
    %v138 = vpop.xlane.xlu0 %137
    %v139 = vld [vmem:[%s1] sm:$0x1]
    %v140 = vld [vmem:[%s1 + $0x1] sm:$0x1]
    %v141 = vlaneseq
    %v142 = vshrl.u32 %v141, 7
    %v143 = vadd.s32 %v142, 8
    %v144 = vlaneseq
    %v145 = vshrl.u32 %v144, 7
    %v146 = vsub.s32 0, %v145
    %v147 = vrot.slane %v139, %v146
    %vm148 = vcmp.eq.s32.totalorder %v142, %v147
    %vm149 = vcmp.eq.s32.totalorder %v143, %v147
    %v150 = vlaneseq
    %v151 = vshrl.u32 %v150, 7
    %v152 = vsub.s32 0, %v151
    %v153 = vrot.slane %v140, %v152
    %vm154 = vcmp.eq.s32.totalorder %v142, %v153
    %vm155 = vcmp.eq.s32.totalorder %v143, %v153
    %v156 = vsel %vm148, %v126, 0.0
    %v157 = vsel %vm149, %v128, 0.0
    %v158 = vsel %vm154, %v136, 0.0
    %v159 = vsel %vm155, %v138, 0.0
    %v160 = vadd.f32 %v156, %v158
    %v161 = vadd.f32 %v157, %v159
    %v162 = vadd.f32 %v160, %v161
    %v163 = vrot.slane %v162, 4
    %v164 = vadd.f32 %v162, %v163
    %v165 = vrot.slane %v164, 2
    %v166 = vadd.f32 %v164, %v165
    %v167 = vrot.slane %v166, 1
    %v168 = vadd.f32 %v166, %v167
    %v169 = vsel %vm148, %v168, -1e+30
    %v170 = vsel %vm149, %v168, -1e+30
    %171 = vmax.xlane.f32.xlu0 %v169
    %v172 = vpop.xlane.xlu0 %171
    %173 = vmax.xlane.f32.xlu0 %v170
    %v174 = vpop.xlane.xlu0 %173
    %v175 = vsel %vm148, %v172, 0.0
    %v176 = vsel %vm149, %v174, 0.0
    %v177 = vadd.f32 %v175, %v176
    %v178 = vrot.slane %v177, 4
    %v179 = vadd.f32 %v177, %v178
    %v180 = vrot.slane %v179, 2
    %v181 = vadd.f32 %v179, %v180
    %v182 = vrot.slane %v181, 1
    %v183 = vadd.f32 %v181, %v182
    %v184 = vsub.f32 %v168, %v183
    %v185 = vmul.f32 %v184, 1.442695
    %v186 = vpow.pop %v185
    %v187 = vsel %vm148, %v186, 0.0
    %v188 = vsel %vm149, %v186, 0.0
    %189 = vadd.xlane.f32.xlu0 %v187
    %v190 = vpop.xlane.xlu0 %189
    %191 = vadd.xlane.f32.xlu0 %v188
    %v192 = vpop.xlane.xlu0 %191
    %vm193 = vcmp.gt.f32.partialorder %v190, 0.0
    %vm194 = vcmp.gt.f32.partialorder %v192, 0.0
    %v195 = vsel %vm193, %v190, 1.0
    %v196 = vsel %vm194, %v192, 1.0
    %v197 = vrcp.pop %v195
    %v198 = vmul.f32 1.0, %v197
    %v199 = vrcp.pop %v196
    %v200 = vmul.f32 1.0, %v199
    %v201 = vpack.c.bf16 %v118, %v117
    %v202 = vsel %vm154, 1, 0
    %v203 = vsel %vm155, 1, 0
    %v204 = vcvt.s32.f32 %v202
    %v205 = vcvt.s32.f32 %v203
    %v206 = vpack.c.bf16 %v205, %v204
    %v207 = vpack.c.bf16 %v188, %v187
    %208 = vmatprep.subr.bf16.mxu0 0
    %209 = vmatpush1.bf16.xpose.msra.mxu0 0
    %210 = vmatprep.subr.bf16.mxu0 0
    %211 = vmatpush1.bf16.xpose.msra.mxu0 0
    %212 = vmatprep.subr.bf16.mxu0 0
    %213 = vmatpush1.bf16.xpose.msra.mxu0 0
    %214 = vmatprep.subr.bf16.mxu0 0
    %215 = vmatpush1.bf16.xpose.msra.mxu0 0
    %216 = vmatprep.subr.bf16.mxu0 0
    %217 = vmatpush1.bf16.xpose.msra.mxu0 0
    %218 = vmatprep.subr.bf16.mxu0 0
    %219 = vmatpush1.bf16.xpose.msra.mxu0 0
    %220 = vmatprep.subr.bf16.mxu0 0
    %221 = vmatpush1.bf16.xpose.msra.mxu0 0
    %222 = vmatprep.subr.bf16.mxu0 0
    %223 = vmatpush1.bf16.xpose.msra.mxu0 %v206
    %224 = vmatprep.subr.bf16.mxu0 0
    %225 = vmatpush2.bf16.xpose.msra.mxu0 0
    %226 = vmatprep.subr.bf16.mxu0 0
    %227 = vmatpush2.bf16.xpose.msra.mxu0 0
    %228 = vmatprep.subr.bf16.mxu0 0
    %229 = vmatpush2.bf16.xpose.msra.mxu0 0
    %230 = vmatprep.subr.bf16.mxu0 0
    %231 = vmatpush2.bf16.xpose.msra.mxu0 0
    %232 = vmatprep.subr.bf16.mxu0 0
    %233 = vmatpush2.bf16.xpose.msra.mxu0 0
    %234 = vmatprep.subr.bf16.mxu0 0
    %235 = vmatpush2.bf16.xpose.msra.mxu0 0
    %236 = vmatprep.subr.bf16.mxu0 0
    %237 = vmatpush2.bf16.xpose.msra.mxu0 0
    %238 = vmatprep.subr.bf16.mxu0 0
    %239 = vmatpush2.bf16.xpose.msra.mxu0 0
    %240 = vmatprep.mubr.bf16.mxu0 0
    %241 = vmatmul.mubr.bf16.gmra.mxu0 %v207
    %v242 = vpop.f32.mrf.mxu0
    %v243 = vadd.f32 0.0, %v242
    %v244 = vpop.f32.mrf.mxu0
    %v245 = vpop.f32.mrf.mxu0
    %v246 = vadd.f32 0.0, %v245
    %v247 = vpop.f32.mrf.mxu0
    %248 = vdwg.mxu0
    %v249 = vpack.c.bf16 %v246, %v243
    %vm250 = vcmask 130048
    %v252 = vsel %vm250, %v249, 0
    %254 = vmatprep.subr.bf16.mxu0 0
    %255 = vmatpush1.bf16.msra.mxu0 0
    %256 = vmatprep.subr.bf16.mxu0 0
    %257 = vmatpush1.bf16.msra.mxu0 0
    %258 = vmatprep.subr.bf16.mxu0 0
    %259 = vmatpush1.bf16.msra.mxu0 0
    %260 = vmatprep.subr.bf16.mxu0 0
    %261 = vmatpush1.bf16.msra.mxu0 0
    %262 = vmatprep.subr.bf16.mxu0 0
    %263 = vmatpush1.bf16.msra.mxu0 0
    %264 = vmatprep.subr.bf16.mxu0 0
    %265 = vmatpush1.bf16.msra.mxu0 0
    %266 = vmatprep.subr.bf16.mxu0 0
    %267 = vmatpush1.bf16.msra.mxu0 0
    %268 = vmatprep.subr.bf16.mxu0 0
    %269 = vmatpush1.bf16.msra.mxu0 %v201
    %270 = vmatprep.subr.bf16.mxu0 0
    %271 = vmatpush2.bf16.msra.mxu0 0
    %272 = vmatprep.subr.bf16.mxu0 0
    %273 = vmatpush2.bf16.msra.mxu0 0
    %274 = vmatprep.subr.bf16.mxu0 0
    %275 = vmatpush2.bf16.msra.mxu0 0
    %276 = vmatprep.subr.bf16.mxu0 0
    %277 = vmatpush2.bf16.msra.mxu0 0
    %278 = vmatprep.subr.bf16.mxu0 0
    %279 = vmatpush2.bf16.msra.mxu0 0
    %280 = vmatprep.subr.bf16.mxu0 0
    %281 = vmatpush2.bf16.msra.mxu0 0
    %282 = vmatprep.subr.bf16.mxu0 0
    %283 = vmatpush2.bf16.msra.mxu0 0
    %284 = vmatprep.subr.bf16.mxu0 0
    %285 = vmatpush2.bf16.msra.mxu0 0
    %286 = vmatprep.mubr.bf16.mxu0 0
    %287 = vmatmul.mubr.bf16.gmra.mxu0 %v252
    %v288 = vpop.f32.mrf.mxu0
    %v289 = vadd.f32 0.0, %v288
    %v290 = vpop.f32.mrf.mxu0
    %v291 = vpop.f32.mrf.mxu0
    %v292 = vadd.f32 0.0, %v291
    %v293 = vpop.f32.mrf.mxu0
    %294 = vdwg.mxu0
    %v295 = vmul.f32 %v289, %v198
    %v296 = vmul.f32 %v292, %v200
    %v297 = vadd.f32 %v295, %v117
    %v298 = vadd.f32 %v296, %v118
    %vm299 = vcmp.ge.f32.partialorder %v297, 0.0
    %vm300 = vcmp.ge.f32.partialorder %v298, 0.0
    %v301 = vmul.f32 %v297, 0.2
    %v302 = vmul.f32 %v298, 0.2
    %v303 = vsel %vm299, %v297, %v301
    %v304 = vsel %vm300, %v298, %v302
    %305 = vadd.xlane.f32.xlu0 %v303
    %v306 = vpop.xlane.xlu0 %305
    %307 = vadd.xlane.f32.xlu0 %v304
    %v308 = vpop.xlane.xlu0 %307
    %v309 = vrcp.pop 128.0
    %v310 = vmul.f32 %v306, %v309
    %v311 = vmul.f32 %v308, %v309
    %v312 = vsub.f32 %v303, %v310
    %v313 = vsub.f32 %v304, %v311
    %v314 = vmul.f32 %v312, %v312
    %v315 = vmul.f32 %v313, %v313
    %316 = vadd.xlane.f32.xlu0 %v314
    %v317 = vpop.xlane.xlu0 %316
    %318 = vadd.xlane.f32.xlu0 %v315
    %v319 = vpop.xlane.xlu0 %318
    %v320 = vmul.f32 %v317, %v309
    %v321 = vmul.f32 %v319, %v309
    %v322 = vadd.f32 %v320, 1e-05
    %v323 = vadd.f32 %v321, 1e-05
    %v324 = vrsqrt.pop %v322
    %v325 = vrsqrt.pop %v323
    %v326 = vmul.f32 %v312, %v324
    %v327 = vmul.f32 %v313, %v325
    %v328 = vlaneseq
    %v329 = vshrl.u32 %v328, 7
    %v330 = vsub.s32 0, %v329
    %v331 = vrot.slane %v22, %v330
    %v332 = vmul.f32 %v326, %v331
    %v333 = vmul.f32 %v327, %v331
    %v334 = vlaneseq
    %v335 = vshrl.u32 %v334, 7
    %v336 = vsub.s32 0, %v335
    %v337 = vrot.slane %v23, %v336
    %v338 = vadd.f32 %v332, %v337
    %v339 = vadd.f32 %v333, %v337
    %340 = vst [vmem:[#allocation2] sm:$0xff] %v338
    %341 = vst [vmem:[#allocation2 + $0x8] sm:$0xff] %v339
    // Predicated region
    $region18: #{tpu_custom_call.1} parent=1 // pred_check
      _
    $region19: #{tpu_custom_call.1} parent=1 // pred_check_branch
      %343 = sbr.rel (0) target = $region21
    $region20: #{tpu_custom_call.1} parent=1 // pred_region
      %s345 = ssub.s32 256, 256
      %346 = vsyncadd [#allocation3], %s345
      %s347 = sshll.u32 [#allocation2], 4
      %s348 = int_to_ptr.vmem [resolvable:$true] %s347
      %353 = dma.vmem_to_hbm [thread:$0]  %s348, 256, %s4, [#allocation3], 128, 128, 8
    $region21: #{tpu_custom_call.1} parent=1 // pred_fallthru
      _
    // Predicated region
    $region22: #{tpu_custom_call.1} parent=1 // pred_check
      _
    $region23: #{tpu_custom_call.1} parent=1 // pred_check_branch
      %355 = sbr.rel (0) target = $region25
    $region24: #{tpu_custom_call.1} parent=1 // pred_region
      %356 = dma.done [#allocation3], 256
    $region25: #{tpu_custom_call.1} parent=1 // pred_fallthru
      _
    %357 = vsyncpa [#allocation3], 1

</llo_original>
